<compile_context>
chip_gen: v7x
topology: tpu7x:2x2x1
jax: 0.10.0
libtpu: 0.0.40
codegen_flags: <defaults>
</compile_context>

<pallas_src>
import functools

import jax
import jax.numpy as jnp
from jax.experimental import pallas as pl
from jax.experimental.pallas import tpu as pltpu


def _round_up(x, m):
    return ((x + m - 1) // m) * m


def conv_decomp_kernel(w_ref, p_ref, o_ref):
    # out^T tile = W @ P^T tile : (FP, TN). Single MXU contraction over K.
    o_ref[...] = jnp.dot(w_ref[...], p_ref[...],
                         preferred_element_type=jnp.float32)


def _im2col_t(x, fh, fw):
    # x: (C, H, W) -> P^T: (fh*fw*C, Ho*Wo); K flattened in (kh, kw, c) order,
    # matching the torch unfold/unfold/reshape/permute ordering.
    C, H, W = x.shape
    Ho, Wo = H - fh + 1, W - fw + 1
    slices = [x[:, kh:kh + Ho, kw:kw + Wo]          # (C, Ho, Wo)
              for kh in range(fh) for kw in range(fw)]
    return jnp.stack(slices, axis=0).reshape(fh * fw * C, Ho * Wo)


@functools.partial(jax.jit, static_argnames=("tn_max",))
def conv_decomp_forward(x, factor0, factor1, factor2, factor3, tn_max=8192):
    x = x.astype(jnp.float32)
    C, H, W = x.shape
    F, _ = factor0.shape
    fh, fw = factor1.shape[0], factor2.shape[0]
    Ho, Wo = H - fh + 1, W - fw + 1
    N = Ho * Wo
    K = fh * fw * C

    # Fused CP weight: Wt[f,(kh,kw,c)] = sum_r f1[kh,r] f2[kw,r] f3[c,r] f0[f,r]
    wt = jnp.einsum(
        'br,cr,dr,fr->fbcd',
        factor1.astype(jnp.float32), factor2.astype(jnp.float32),
        factor3.astype(jnp.float32), factor0.astype(jnp.float32),
    ).reshape(F, K)
    FP = _round_up(F, 8)                              # sublane-exact output rows
    if FP != F:
        wt = jnp.pad(wt, ((0, FP - F), (0, 0)))

    # Transposed patch matrix; pad only the N (lane) axis to the tile width.
    pt = _im2col_t(x, fh, fw)                         # (K, N)
    TN = min(tn_max, _round_up(N, 128))               # lane tile along Ho*Wo
    NP = _round_up(N, TN)
    if NP != N:
        pt = jnp.pad(pt, ((0, 0), (0, NP - N)))       # zero cols -> discarded

    grid = (NP // TN,)
    cost = pl.CostEstimate(
        flops=2 * NP * K * FP,
        transcendentals=0,
        bytes_accessed=int(pt.size * 4 + wt.size * 4 + FP * NP * 4),
    )

    out_t = pl.pallas_call(
        conv_decomp_kernel,
        out_shape=jax.ShapeDtypeStruct((FP, NP), jnp.float32),
        grid=grid,
        in_specs=[
            pl.BlockSpec((FP, K), lambda i: (0, 0)),   # fused weight, resident
            pl.BlockSpec((K, TN), lambda i: (0, i)),   # P^T tile (no K padding)
        ],
        out_specs=pl.BlockSpec((FP, TN), lambda i: (0, i)),  # lane-dense out^T
        compiler_params=pltpu.CompilerParams(
            dimension_semantics=("parallel",)),
        cost_estimate=cost,
    )(wt, pt)

    # (F, Ho*Wo) -> (F, Ho, Wo); no transpose needed (torch permute(2,0,1)
    # is already baked into the transposed output layout).
    return out_t[:F, :N].reshape(F, Ho, Wo)


def reference_forward(x, f0, f1, f2, f3):
    # Direct pure-JAX transcription of the PyTorch per-rank einsum loop.
    x = x.astype(jnp.float32)
    C, H, W = x.shape
    fh, fw = f1.shape[0], f2.shape[0]
    Ho, Wo = H - fh + 1, W - fw + 1
    slices = [x[:, kh:kh + Ho, kw:kw + Wo]
              for kh in range(fh) for kw in range(fw)]
    P = jnp.stack(slices, 0).reshape(fh, fw, C, Ho * Wo).transpose(3, 0, 1, 2)
    out = None
    for i in range(f0.shape[1]):
        r = jnp.einsum('abcd,d->abc', P, f3[:, i].astype(jnp.float32))
        r = jnp.einsum('abc,c->ab', r, f2[:, i].astype(jnp.float32))
        r = jnp.einsum('ab,b->a', r, f1[:, i].astype(jnp.float32))
        r = jnp.einsum('a,b->ab', r, f0[:, i].astype(jnp.float32))
        out = r if out is None else out + r
    out = out.reshape(Ho, Wo, f0.shape[0])
    return jnp.transpose(out, (2, 0, 1))


if __name__ == "__main__":
    # Small shapes consistent with the module (3x3 filter is implied by the
    # hard-coded H-2, W-2 output reshape in the torch forward).
    num_filters, filter_h, filter_w, image_channels, rank = 8, 3, 3, 4, 4
    H = W = 16

    key = jax.random.PRNGKey(0)
    k0, k1, k2, k3, kx = jax.random.split(key, 5)
    # TODO(synk): the torch __init__ runs tensorly parafac on a random filter
    # bank; here the CP factor matrices are initialized directly (same shapes).
    factor0 = jax.random.normal(k0, (num_filters, rank), jnp.float32) / (filter_h * filter_w)
    factor1 = jax.random.normal(k1, (filter_h, rank), jnp.float32)
    factor2 = jax.random.normal(k2, (filter_w, rank), jnp.float32)
    factor3 = jax.random.normal(k3, (image_channels, rank), jnp.float32)

    x = jax.random.normal(kx, (image_channels, H, W), jnp.float32)

    out = conv_decomp_forward(x, factor0, factor1, factor2, factor3)
    out = jax.block_until_ready(out)

    ref = reference_forward(x, factor0, factor1, factor2, factor3)
    assert out.shape == (num_filters, H - 2, W - 2), out.shape
    assert jnp.allclose(out, ref, atol=1e-3, rtol=1e-3), float(
        jnp.max(jnp.abs(out - ref)))

    print("KERNEL_OK")
</pallas_src>

<mosaic_0001>
module attributes {stable_mosaic.version = 11 : i64} {
  func.func @conv_decomp_kernel(%arg0: i32, %arg1: memref<8x36xf32, #tpu.memory_space<vmem>>, %arg2: memref<36x256xf32, #tpu.memory_space<vmem>>, %arg3: memref<8x256xf32, #tpu.memory_space<vmem>>) attributes {dimension_semantics = [#tpu.dimension_semantics<parallel>], iteration_bounds = array<i64: 1>, scalar_prefetch = 0 : i64, scratch_operands = 0 : i64, tpu.core_type = #tpu.core_type<tc>, window_params = [{pipeline_mode = #tpu.pipeline_mode<synchronous>, transform_indices = @transform_0, window_bounds = array<i64: 8, 36>}, {transform_indices = @transform_1, window_bounds = array<i64: 36, 256>}, {transform_indices = @transform_2, window_bounds = array<i64: 8, 256>}]} {
    %c0 = arith.constant 0 : index
    %c0_0 = arith.constant 0 : index
    %0 = vector.load %arg1[%c0, %c0_0] : memref<8x36xf32, #tpu.memory_space<vmem>>, vector<8x36xf32>
    %c0_1 = arith.constant 0 : index
    %c0_2 = arith.constant 0 : index
    %1 = vector.load %arg2[%c0_1, %c0_2] : memref<36x256xf32, #tpu.memory_space<vmem>>, vector<36x256xf32>
    %cst = arith.constant dense<0.000000e+00> : vector<8x256xf32>
    %2 = tpu.matmul %0, %1, %cst {dimension_numbers = #tpu.dot_dimension_numbers<[1], [0], [0], [1], [0, 0, 1, 1], [], []>} : vector<8x36xf32>, vector<36x256xf32>, vector<8x256xf32> -> vector<8x256xf32>
    %c0_3 = arith.constant 0 : index
    %c0_4 = arith.constant 0 : index
    %3 = vector.load %arg3[%c0_3, %c0_4] : memref<8x256xf32, #tpu.memory_space<vmem>>, vector<8x256xf32>
    tpu.vector_store %arg3[%c0_3, %c0_4], %2 {strides = array<i32>} : memref<8x256xf32, #tpu.memory_space<vmem>>, vector<8x256xf32>,
    return
  }
  func.func @transform_0(%arg0: i32) -> (i32, i32) {
    %c0_i32 = arith.constant 0 : i32
    %c0_i32_0 = arith.constant 0 : i32
    %c0_i32_1 = arith.constant 0 : i32
    return %c0_i32, %c0_i32_0 : i32, i32
  }
  func.func @transform_1(%arg0: i32) -> (i32, i32) {
    %c0_i32 = arith.constant 0 : i32
    %c0_i32_0 = arith.constant 0 : i32
    return %c0_i32, %arg0 : i32, i32
  }
  func.func @transform_2(%arg0: i32) -> (i32, i32) {
    %c0_i32 = arith.constant 0 : i32
    %c0_i32_0 = arith.constant 0 : i32
    return %c0_i32, %arg0 : i32, i32
  }
}

</mosaic_0001>

<llo_original>
// kernel: conv_decomp_forward.1
$region0: #{conv_decomp_forward.1}
  #allocation0 [shape = 'u32[]', space=smem, size = 0x4, offset = 0x4, fixed_abs, tag = 'smem constant byte address 0x4 - core index']
  #allocation1 [shape = 'u32[144,128]{1,0:T(1,128)}', space=vmem, size = 0x12000, scoped, tag = 'internal scratch']
  %s0 = inlined_call_operand.vmem [shape: f32[8,36], index: 0, kind: input, shape index: {}]
  %s1 = inlined_call_operand.vmem [shape: f32[36,256], index: 1, kind: input, shape index: {}]
  %s2 = inlined_call_operand.vmem [shape: f32[8,256], index: 2, kind: output, shape index: {}]
  %s3 = sld [smem:[#allocation0]]
  $region18: #{conv_decomp_forward.1} parent=0
    _
  %s5 = ssub.s32 1, %s3
  %s6 = scalar_select 0, %s5, %s3
  // Predicated region
  $region2: #{conv_decomp_forward.1} parent=0 // pred_check
    _
  $region3: #{conv_decomp_forward.1} parent=0 // pred_check_branch
    %8 = sbr.rel (0) target = $region5
  $region4: #{conv_decomp_forward.1} parent=0 // pred_region
    _
  $region5: #{conv_decomp_forward.1} parent=0 // pred_fallthru
    _
  // Predicated region
  $region6: #{conv_decomp_forward.1} parent=0 // pred_check
    _
  $region7: #{conv_decomp_forward.1} parent=0 // pred_check_branch
    %10 = sbr.rel (0) target = $region9
  $region8: #{conv_decomp_forward.1} parent=0 // pred_region
    _
  $region9: #{conv_decomp_forward.1} parent=0 // pred_fallthru
    _
  %v11 = vld [vmem:[%s0] sm:$0xff]
  %v12 = vld [vmem:[%s1] sm:$0xff]
  %v13 = vld [vmem:[%s1 + $0x8] sm:$0xff]
  %v14 = vld [vmem:[%s1 + $0x10] sm:$0xff]
  %v15 = vld [vmem:[%s1 + $0x18] sm:$0xff]
  %v16 = vld [vmem:[%s1 + $0x20] sm:$0xff]
  %v17 = vld [vmem:[%s1 + $0x28] sm:$0xff]
  %v18 = vld [vmem:[%s1 + $0x30] sm:$0xff]
  %v19 = vld [vmem:[%s1 + $0x38] sm:$0xff]
  %v20 = vld [vmem:[%s1 + $0x40] sm:$0xf]
  %v21 = vld [vmem:[%s1 + $0x48] sm:$0xf]
  %vm22 = vcmask 293888
  %v24 = vsel %vm22, %v11, 0
  %vm26 = vcmask 1043456
  %v28 = vsel %vm26, %v20, 0
  %v31 = vsel %vm26, %v21, 0
  %33 = vmatprep.subr.mxu0 %v13
  %34 = vmatpush1.msra.mxu0 %v12
  %35 = vmatprep.subr.mxu0 %v15
  %36 = vmatpush1.msra.mxu0 %v14
  %37 = vmatprep.subr.mxu0 %v17
  %38 = vmatpush1.msra.mxu0 %v16
  %39 = vmatprep.subr.mxu0 %v19
  %40 = vmatpush1.msra.mxu0 %v18
  %41 = vmatprep.subr.mxu0 %v31
  %42 = vmatpush1.msra.mxu0 %v28
  %43 = vmatprep.subr.mxu0 0.0
  %44 = vmatpush1.msra.mxu0 0.0
  %45 = vmatprep.subr.mxu0 0.0
  %46 = vmatpush1.msra.mxu0 0.0
  %47 = vmatprep.subr.mxu0 0.0
  %48 = vmatpush1.msra.mxu0 0.0
  %49 = vmatprep.subr.mxu0 0.0
  %50 = vmatpush1.msra.mxu0 0.0
  %51 = vmatprep.subr.mxu0 0.0
  %52 = vmatpush1.msra.mxu0 0.0
  %53 = vmatprep.subr.mxu0 0.0
  %54 = vmatpush1.msra.mxu0 0.0
  %55 = vmatprep.subr.mxu0 0.0
  %56 = vmatpush1.msra.mxu0 0.0
  %57 = vmatprep.subr.mxu0 0.0
  %58 = vmatpush1.msra.mxu0 0.0
  %59 = vmatprep.subr.mxu0 0.0
  %60 = vmatpush1.msra.mxu0 0.0
  %61 = vmatprep.subr.mxu0 0.0
  %62 = vmatpush1.msra.mxu0 0.0
  %63 = vmatprep.subr.mxu0 0.0
  %64 = vmatpush1.msra.mxu0 0.0
  %65 = vmatprep.subr.mxu0 0.0
  %66 = vmatpush1.msra.mxu0 0.0
  %67 = vmatprep.subr.mxu0 0.0
  %68 = vmatpush1.msra.mxu0 0.0
  %69 = vmatprep.subr.mxu0 0.0
  %70 = vmatpush1.msra.mxu0 0.0
  %71 = vmatprep.subr.mxu0 0.0
  %72 = vmatpush1.msra.mxu0 0.0
  %73 = vmatprep.subr.mxu0 0.0
  %74 = vmatpush1.msra.mxu0 0.0
  %75 = vmatprep.subr.mxu0 0.0
  %76 = vmatpush1.msra.mxu0 0.0
  %77 = vmatprep.subr.mxu0 0.0
  %78 = vmatpush1.msra.mxu0 0.0
  %79 = vmatprep.subr.mxu0 0.0
  %80 = vmatpush1.msra.mxu0 0.0
  %81 = vmatprep.subr.mxu0 0.0
  %82 = vmatpush1.msra.mxu0 0.0
  %83 = vmatprep.subr.mxu0 0.0
  %84 = vmatpush1.msra.mxu0 0.0
  %85 = vmatprep.subr.mxu0 0.0
  %86 = vmatpush1.msra.mxu0 0.0
  %87 = vmatprep.subr.mxu0 0.0
  %88 = vmatpush1.msra.mxu0 0.0
  %89 = vmatprep.subr.mxu0 0.0
  %90 = vmatpush1.msra.mxu0 0.0
  %91 = vmatprep.subr.mxu0 0.0
  %92 = vmatpush1.msra.mxu0 0.0
  %93 = vmatprep.subr.mxu0 0.0
  %94 = vmatpush1.msra.mxu0 0.0
  %95 = vmatprep.subr.mxu0 0.0
  %96 = vmatpush1.msra.mxu0 0.0
  %97 = vmatprep.mubr.f32.mxu0 0.0
  %98 = vmatmul.mubr.f32.gmra.mrb[0].mxu0 %v24
  %v99 = vpop.f32.mrb[0].mxu0
  %v100 = vadd.f32 0.0, %v99
  %v101 = vpop.f32.mrb[0].mxu0
  %v102 = vadd.f32 0.0, %v101
  %103 = vdwg.mxu0
  %104 = vst [vmem:[%s2] sm:$0xff] %v100
  %105 = vst [vmem:[%s2 + $0x8] sm:$0xff] %v102
  // Predicated region
  $region10: #{conv_decomp_forward.1} parent=0 // pred_check
    _
  $region11: #{conv_decomp_forward.1} parent=0 // pred_check_branch
    %107 = sbr.rel (0) target = $region13
  $region12: #{conv_decomp_forward.1} parent=0 // pred_region
    _
  $region13: #{conv_decomp_forward.1} parent=0 // pred_fallthru
    _
  // Predicated region
  $region14: #{conv_decomp_forward.1} parent=0 // pred_check
    _
  $region15: #{conv_decomp_forward.1} parent=0 // pred_check_branch
    %109 = sbr.rel (0) target = $region17
  $region16: #{conv_decomp_forward.1} parent=0 // pred_region
    _
  $region17: #{conv_decomp_forward.1} parent=0 // pred_fallthru
    _

</llo_original>
